<compile_context>
chip_gen: v6e
topology: v6e:2x2x1
jax: 0.10.0
libtpu: 0.0.40
codegen_flags: <defaults>
</compile_context>

<pallas_src>
import jax
import jax.numpy as jnp
from jax.experimental import pallas as pl
from jax.experimental.pallas import tpu as pltpu

_HBM_NSEM = 16        # DMA-semaphore ring depth (HBM fallback path); power of 2
_VMEM_UNROLL = 8      # rows per statically-unrolled group (VMEM fast path)
_VMEM_TABLE_BYTES_MAX = 8 * 1024 * 1024   # resident-table threshold (safe on v7x 64 MiB/TC)
_OUT_BLOCK_BYTES_MAX = 4 * 1024 * 1024    # cap on one output block (it is double-buffered)


def _round_up(x, m):
    return (x + m - 1) // m * m


def _choose_tile(n_tokens, granule, max_tile):
    """Pick the token-tile size.  Prefer one that divides n_tokens exactly so
    the output shape is exact (no padded rows, no epilogue slice copy)."""
    max_tile = _round_up(max(granule, min(max_tile, n_tokens)), granule)
    if n_tokens % granule == 0:
        floor = max(granule, max_tile // 4)      # keep per-grid-step overhead amortized
        for cand in range(max_tile, floor - 1, -granule):
            if n_tokens % cand == 0:
                return cand, n_tokens
    return max_tile, _round_up(n_tokens, max_tile)


# -----------------------------------------------------------------------------
# Fast path: embedding table resident in VMEM; gather with on-chip row copies.
# -----------------------------------------------------------------------------
def _gather_vmem_kernel(ids_ref, table_ref, out_ref):
    # ids_ref:   (n_padded,) int32  SMEM  (scalar prefetch)
    # table_ref: (vocab, E)         VMEM  (constant index_map -> resident)
    # out_ref:   (tile, E)          VMEM  (pipelined output block)
    tile = out_ref.shape[0]
    base = pl.program_id(0) * tile

    @pl.loop(0, tile // _VMEM_UNROLL)
    def _(g):
        t0 = g * _VMEM_UNROLL
        # Statically unrolled group: scalar id read + dynamic-row vreg copy.
        for u in range(_VMEM_UNROLL):
            t = t0 + u
            row = ids_ref[base + t]
            out_ref[pl.ds(t, 1), :] = table_ref[pl.ds(row, 1), :]


# -----------------------------------------------------------------------------
# Fallback: table stays in HBM; per-row DMA gather through a semaphore ring.
# -----------------------------------------------------------------------------
def _gather_hbm_kernel(ids_ref, table_hbm, out_ref, sem):
    # ids_ref:   (n_padded,) int32  SMEM   (scalar prefetch)
    # table_hbm: (vocab, E)         HBM    (memory_space=pl.ANY; manual DMA)
    # out_ref:   (tile, E)          VMEM   (pipelined output block)
    # sem:       (_HBM_NSEM,)              DMA semaphores
    tile = out_ref.shape[0]
    base = pl.program_id(0) * tile
    n_groups = tile // _HBM_NSEM

    def start_row(t, slot, row):
        pltpu.make_async_copy(
            table_hbm.at[pl.ds(row, 1), :],    # (1, E) row in HBM
            out_ref.at[pl.ds(t, 1), :],        # (1, E) row of the output tile
            sem.at[slot],
        ).start()

    def wait_slot(slot):
        # Every copy moves the identical (1, E) byte count, so a shape-only
        # descriptor retires the oldest outstanding copy on this slot.
        pltpu.make_async_copy(
            table_hbm.at[pl.ds(0, 1), :],
            out_ref.at[pl.ds(0, 1), :],
            sem.at[slot],
        ).wait()

    # Prime: one outstanding row fetch per semaphore slot.
    for slot in range(_HBM_NSEM):
        start_row(slot, slot, ids_ref[base + slot])

    # Steady state: groups of _HBM_NSEM rows.  Slot indices are compile-time
    # constants (statically unrolled); all SMEM id reads of the group are
    # hoisted above the semaphore waits.
    if n_groups > 1:
        @pl.loop(1, n_groups)
        def _(g):
            t0 = g * _HBM_NSEM
            rows = [ids_ref[base + t0 + slot] for slot in range(_HBM_NSEM)]
            for slot in range(_HBM_NSEM):
                wait_slot(slot)
                start_row(t0 + slot, slot, rows[slot])

    # Drain: exactly one copy still outstanding on every slot.
    for slot in range(_HBM_NSEM):
        wait_slot(slot)


def embedding_lookup(input_ids, table, *, tile_tokens=512, force_hbm_gather=False):
    """input_ids: (batch, seq) int, table: (vocab, emsize) float
    -> (batch, seq, emsize)   (== nn.Embedding forward)."""
    batch, seq = input_ids.shape
    vocab, emsize = table.shape
    itemsize = jnp.dtype(table.dtype).itemsize
    n_tokens = batch * seq

    table_bytes = vocab * emsize * itemsize
    use_vmem_table = (table_bytes <= _VMEM_TABLE_BYTES_MAX) and not force_hbm_gather
    granule = _VMEM_UNROLL if use_vmem_table else _HBM_NSEM

    max_tile = min(tile_tokens,
                   max(granule, _OUT_BLOCK_BYTES_MAX // max(1, emsize * itemsize)))
    tile, n_padded = _choose_tile(n_tokens, granule, max_tile)
    n_tiles = n_padded // tile

    ids = input_ids.reshape(-1).astype(jnp.int32)
    ids = jnp.clip(ids, 0, vocab - 1)            # guard against OOB row fetches
    if n_padded != n_tokens:
        ids = jnp.pad(ids, (0, n_padded - n_tokens))   # pad with valid row 0

    out_spec = pl.BlockSpec((tile, emsize), lambda i, ids_sp: (i, 0))
    out_block_bytes = tile * emsize * itemsize

    if use_vmem_table:
        kernel = _gather_vmem_kernel
        in_specs = [pl.BlockSpec((vocab, emsize), lambda i, ids_sp: (0, 0))]
        scratch_shapes = []
        vmem_need = 2 * table_bytes + 2 * out_block_bytes + (4 << 20)
        bytes_accessed = table_bytes + 2 * n_tokens * emsize * itemsize
    else:
        kernel = _gather_hbm_kernel
        in_specs = [pl.BlockSpec(memory_space=pl.ANY)]       # table stays in HBM
        scratch_shapes = [pltpu.SemaphoreType.DMA((_HBM_NSEM,))]
        vmem_need = 4 * out_block_bytes + (4 << 20)
        bytes_accessed = 2 * n_tokens * emsize * itemsize

    out_flat = pl.pallas_call(
        kernel,
        out_shape=jax.ShapeDtypeStruct((n_padded, emsize), table.dtype),
        grid_spec=pltpu.PrefetchScalarGridSpec(
            num_scalar_prefetch=1,                            # ids -> SMEM
            grid=(n_tiles,),
            in_specs=in_specs,
            out_specs=out_spec,
            scratch_shapes=scratch_shapes),
        compiler_params=pltpu.CompilerParams(
            # Grid steps are independent.  (On v7x, pltpu.CORE_PARALLEL would
            # split the token axis across both TensorCores; kept portable here.)
            dimension_semantics=("parallel",),
            vmem_limit_bytes=int(min(max(vmem_need, 32 << 20), 64 << 20))),
        cost_estimate=pl.CostEstimate(flops=0, transcendentals=0,
                                      bytes_accessed=int(bytes_accessed)),
    )(ids, table)

    if n_padded != n_tokens:
        out_flat = out_flat[:n_tokens]
    return out_flat.reshape(batch, seq, emsize)


if __name__ == "__main__":
    # Small, deterministic setup consistent with the module:
    #   input_size (vocab) = 64, config.emsize = 128.
    vocab, emsize = 64, 128

    key = jax.random.PRNGKey(0)
    k_w, k_idx = jax.random.split(key)
    # nn.Embedding default init: N(0, 1)
    table = jax.random.normal(k_w, (vocab, emsize), dtype=jnp.float32)

    # --- VMEM-resident fast path (table is 32 KiB -> resident) ---------------
    batch, seq = 2, 8
    input_ids = jax.random.randint(k_idx, (batch, seq), 0, vocab, dtype=jnp.int32)
    ref = table[input_ids]

    out_fast = jax.block_until_ready(embedding_lookup(input_ids, table))
    assert out_fast.shape == (batch, seq, emsize)
    assert jnp.array_equal(out_fast, ref), "VMEM-resident path mismatch"

    # --- HBM row-gather fallback (forced, exercises prime/steady/drain) ------
    batch2, seq2 = 4, 16
    input_ids2 = jax.random.randint(jax.random.PRNGKey(1), (batch2, seq2), 0,
                                    vocab, dtype=jnp.int32)
    ref2 = table[input_ids2]
    out_hbm = jax.block_until_ready(
        embedding_lookup(input_ids2, table, force_hbm_gather=True))
    assert jnp.array_equal(out_hbm, ref2), "HBM-gather path mismatch"

    # TODO(synk): emtraining=True adds nn.Dropout, identity at inference; omitted.
    print("KERNEL_OK")
</pallas_src>

<mosaic_0001>
module attributes {stable_mosaic.version = 11 : i64} {
  func.func @_gather_vmem_kernel(%arg0: i32, %arg1: memref<16xi32, #tpu.memory_space<smem>>, %arg2: memref<64x128xf32, #tpu.memory_space<vmem>>, %arg3: memref<16x128xf32, #tpu.memory_space<vmem>>) attributes {dimension_semantics = [#tpu.dimension_semantics<parallel>], iteration_bounds = array<i64: 1>, scalar_prefetch = 1 : i64, scratch_operands = 0 : i64, tpu.core_type = #tpu.core_type<tc>, window_params = [{pipeline_mode = #tpu.pipeline_mode<synchronous>, transform_indices = @transform_0, window_bounds = array<i64: 64, 128>}, {transform_indices = @transform_1, window_bounds = array<i64: 16, 128>}]} {
    %c16_i32 = arith.constant 16 : i32
    %0 = arith.muli %arg0, %c16_i32 : i32
    %c0_i32 = arith.constant 0 : i32
    %c2_i32 = arith.constant 2 : i32
    %1 = arith.addi %c0_i32, %c2_i32 : i32
    %c1_i32 = arith.constant 1 : i32
    scf.for %arg4 = %c0_i32 to %1 step %c1_i32  : i32 {
      %c1_i32_1 = arith.constant 1 : i32
      %2 = arith.muli %arg4, %c1_i32_1 : i32
      %c0_i32_2 = arith.constant 0 : i32
      %3 = arith.addi %c0_i32_2, %2 : i32
      %c8_i32 = arith.constant 8 : i32
      %4 = arith.muli %3, %c8_i32 : i32
      %c0_i32_3 = arith.constant 0 : i32
      %5 = arith.addi %4, %c0_i32_3 : i32
      %6 = arith.addi %0, %5 : i32
      %7 = arith.index_cast %6 : i32 to index
      %8 = memref.load %arg1[%7] : memref<16xi32, #tpu.memory_space<smem>>
      %9 = arith.index_cast %8 : i32 to index
      %c0 = arith.constant 0 : index
      %10 = vector.load %arg2[%9, %c0] : memref<64x128xf32, #tpu.memory_space<vmem>>, vector<1x128xf32>
      %11 = arith.index_cast %5 : i32 to index
      %c0_4 = arith.constant 0 : index
      %12 = vector.load %arg3[%11, %c0_4] : memref<16x128xf32, #tpu.memory_space<vmem>>, vector<1x128xf32>
      tpu.vector_store %arg3[%11, %c0_4], %10 {strides = array<i32>} : memref<16x128xf32, #tpu.memory_space<vmem>>, vector<1x128xf32>,
      %c1_i32_5 = arith.constant 1 : i32
      %13 = arith.addi %4, %c1_i32_5 : i32
      %14 = arith.addi %0, %13 : i32
      %15 = arith.index_cast %14 : i32 to index
      %16 = memref.load %arg1[%15] : memref<16xi32, #tpu.memory_space<smem>>
      %17 = arith.index_cast %16 : i32 to index
      %c0_6 = arith.constant 0 : index
      %18 = vector.load %arg2[%17, %c0_6] : memref<64x128xf32, #tpu.memory_space<vmem>>, vector<1x128xf32>
      %19 = arith.index_cast %13 : i32 to index
      %c0_7 = arith.constant 0 : index
      %20 = vector.load %arg3[%19, %c0_7] : memref<16x128xf32, #tpu.memory_space<vmem>>, vector<1x128xf32>
      tpu.vector_store %arg3[%19, %c0_7], %18 {strides = array<i32>} : memref<16x128xf32, #tpu.memory_space<vmem>>, vector<1x128xf32>,
      %c2_i32_8 = arith.constant 2 : i32
      %21 = arith.addi %4, %c2_i32_8 : i32
      %22 = arith.addi %0, %21 : i32
      %23 = arith.index_cast %22 : i32 to index
      %24 = memref.load %arg1[%23] : memref<16xi32, #tpu.memory_space<smem>>
      %25 = arith.index_cast %24 : i32 to index
      %c0_9 = arith.constant 0 : index
      %26 = vector.load %arg2[%25, %c0_9] : memref<64x128xf32, #tpu.memory_space<vmem>>, vector<1x128xf32>
      %27 = arith.index_cast %21 : i32 to index
      %c0_10 = arith.constant 0 : index
      %28 = vector.load %arg3[%27, %c0_10] : memref<16x128xf32, #tpu.memory_space<vmem>>, vector<1x128xf32>
      tpu.vector_store %arg3[%27, %c0_10], %26 {strides = array<i32>} : memref<16x128xf32, #tpu.memory_space<vmem>>, vector<1x128xf32>,
      %c3_i32 = arith.constant 3 : i32
      %29 = arith.addi %4, %c3_i32 : i32
      %30 = arith.addi %0, %29 : i32
      %31 = arith.index_cast %30 : i32 to index
      %32 = memref.load %arg1[%31] : memref<16xi32, #tpu.memory_space<smem>>
      %33 = arith.index_cast %32 : i32 to index
      %c0_11 = arith.constant 0 : index
      %34 = vector.load %arg2[%33, %c0_11] : memref<64x128xf32, #tpu.memory_space<vmem>>, vector<1x128xf32>
      %35 = arith.index_cast %29 : i32 to index
      %c0_12 = arith.constant 0 : index
      %36 = vector.load %arg3[%35, %c0_12] : memref<16x128xf32, #tpu.memory_space<vmem>>, vector<1x128xf32>
      tpu.vector_store %arg3[%35, %c0_12], %34 {strides = array<i32>} : memref<16x128xf32, #tpu.memory_space<vmem>>, vector<1x128xf32>,
      %c4_i32 = arith.constant 4 : i32
      %37 = arith.addi %4, %c4_i32 : i32
      %38 = arith.addi %0, %37 : i32
      %39 = arith.index_cast %38 : i32 to index
      %40 = memref.load %arg1[%39] : memref<16xi32, #tpu.memory_space<smem>>
      %41 = arith.index_cast %40 : i32 to index
      %c0_13 = arith.constant 0 : index
      %42 = vector.load %arg2[%41, %c0_13] : memref<64x128xf32, #tpu.memory_space<vmem>>, vector<1x128xf32>
      %43 = arith.index_cast %37 : i32 to index
      %c0_14 = arith.constant 0 : index
      %44 = vector.load %arg3[%43, %c0_14] : memref<16x128xf32, #tpu.memory_space<vmem>>, vector<1x128xf32>
      tpu.vector_store %arg3[%43, %c0_14], %42 {strides = array<i32>} : memref<16x128xf32, #tpu.memory_space<vmem>>, vector<1x128xf32>,
      %c5_i32 = arith.constant 5 : i32
      %45 = arith.addi %4, %c5_i32 : i32
      %46 = arith.addi %0, %45 : i32
      %47 = arith.index_cast %46 : i32 to index
      %48 = memref.load %arg1[%47] : memref<16xi32, #tpu.memory_space<smem>>
      %49 = arith.index_cast %48 : i32 to index
      %c0_15 = arith.constant 0 : index
      %50 = vector.load %arg2[%49, %c0_15] : memref<64x128xf32, #tpu.memory_space<vmem>>, vector<1x128xf32>
      %51 = arith.index_cast %45 : i32 to index
      %c0_16 = arith.constant 0 : index
      %52 = vector.load %arg3[%51, %c0_16] : memref<16x128xf32, #tpu.memory_space<vmem>>, vector<1x128xf32>
      tpu.vector_store %arg3[%51, %c0_16], %50 {strides = array<i32>} : memref<16x128xf32, #tpu.memory_space<vmem>>, vector<1x128xf32>,
      %c6_i32 = arith.constant 6 : i32
      %53 = arith.addi %4, %c6_i32 : i32
      %54 = arith.addi %0, %53 : i32
      %55 = arith.index_cast %54 : i32 to index
      %56 = memref.load %arg1[%55] : memref<16xi32, #tpu.memory_space<smem>>
      %57 = arith.index_cast %56 : i32 to index
      %c0_17 = arith.constant 0 : index
      %58 = vector.load %arg2[%57, %c0_17] : memref<64x128xf32, #tpu.memory_space<vmem>>, vector<1x128xf32>
      %59 = arith.index_cast %53 : i32 to index
      %c0_18 = arith.constant 0 : index
      %60 = vector.load %arg3[%59, %c0_18] : memref<16x128xf32, #tpu.memory_space<vmem>>, vector<1x128xf32>
      tpu.vector_store %arg3[%59, %c0_18], %58 {strides = array<i32>} : memref<16x128xf32, #tpu.memory_space<vmem>>, vector<1x128xf32>,
      %c7_i32 = arith.constant 7 : i32
      %61 = arith.addi %4, %c7_i32 : i32
      %62 = arith.addi %0, %61 : i32
      %63 = arith.index_cast %62 : i32 to index
      %64 = memref.load %arg1[%63] : memref<16xi32, #tpu.memory_space<smem>>
      %65 = arith.index_cast %64 : i32 to index
      %c0_19 = arith.constant 0 : index
      %66 = vector.load %arg2[%65, %c0_19] : memref<64x128xf32, #tpu.memory_space<vmem>>, vector<1x128xf32>
      %67 = arith.index_cast %61 : i32 to index
      %c0_20 = arith.constant 0 : index
      %68 = vector.load %arg3[%67, %c0_20] : memref<16x128xf32, #tpu.memory_space<vmem>>, vector<1x128xf32>
      tpu.vector_store %arg3[%67, %c0_20], %66 {strides = array<i32>} : memref<16x128xf32, #tpu.memory_space<vmem>>, vector<1x128xf32>,
    }
    %c2_i32_0 = arith.constant 2 : i32
    return
  }
  func.func @transform_0(%arg0: i32, %arg1: memref<16xi32, #tpu.memory_space<smem>>) -> (i32, i32) {
    %c0_i32 = arith.constant 0 : i32
    %c0_i32_0 = arith.constant 0 : i32
    %c0_i32_1 = arith.constant 0 : i32
    return %c0_i32, %c0_i32_0 : i32, i32
  }
  func.func @transform_1(%arg0: i32, %arg1: memref<16xi32, #tpu.memory_space<smem>>) -> (i32, i32) {
    %c0_i32 = arith.constant 0 : i32
    %c0_i32_0 = arith.constant 0 : i32
    return %arg0, %c0_i32 : i32, i32
  }
}

</mosaic_0001>

<llo_original>
// kernel: tpu_custom_call.1
$region0: #{tpu_custom_call.1}
  #allocation0 [shape = 'u32[]', space=smem, size = 0x4, offset = 0x4, fixed_abs, tag = 'smem constant byte address 0x4 - core index']
  #allocation1 [shape = 'u32[144,128]{1,0:T(1,128)}', space=vmem, size = 0x12000, scoped, tag = 'internal scratch']
  #allocation2 [shape = 's32[1]{0}', space=sflag, size = 0x4, scoped, tag = 'scoped memory for tpu_custom_call.1']
  #allocation3 [shape = 'u8[512]{0}', space=smem, size = 0x200, scoped, tag = 'prefetched SMEM operand 0']
  %s0 = inlined_call_operand.hbm [shape: s32[16], index: 0, kind: input, shape index: {}]
  %s1 = inlined_call_operand.hbm [shape: f32[64,128], index: 1, kind: input, shape index: {}]
  %s2 = inlined_call_operand.hbm [shape: f32[16,128], index: 2, kind: output, shape index: {}]
  %s3 = sld [smem:[#allocation0]]
  $region25: #{tpu_custom_call.1} parent=0
    _
  %s5 = ssub.s32 1, %s3
  %s6 = scalar_select 0, %s5, %s3
  %8 = dma.hbm_to_smem %s0, 16, [#allocation3], [#allocation2]
  %9 = dma.done [#allocation2], 16
  %10 = sfence
  $region1: #{tpu_custom_call.1} parent=0
    #allocation4 [shape = 'u8[32768]{0}', space=vmem, size = 0x8000, scoped, tag = 'input window, operand 1, single buffered']
    #allocation5 [shape = 's32[1]{0}', space=sflag, size = 0x4, scoped, tag = 'scoped memory for tpu_custom_call.1']
    #allocation6 [shape = 's32[1]{0}', space=sflag, size = 0x4, scoped, tag = 'scoped memory for tpu_custom_call.1']
    #allocation7 [shape = 'u8[8192]{0}', space=vmem, size = 0x2000, scoped, tag = 'output window, operand 0, single buffered']
    %11 = vsyncpa [#allocation5], 0
    %12 = vsyncpa [#allocation6], 0
    // Predicated region
    $region2: #{tpu_custom_call.1} parent=1 // pred_check
      _
    $region3: #{tpu_custom_call.1} parent=1 // pred_check_branch
      %14 = sbr.rel (0) target = $region5
    $region4: #{tpu_custom_call.1} parent=1 // pred_region
      %s16 = ssub.s32 1024, 1024
      %17 = vsyncadd [#allocation5], %s16
      %s18 = sshll.u32 [#allocation4], 4
      %s19 = int_to_ptr.vmem [resolvable:$true] %s18
      %24 = dma.hbm_to_vmem [thread:$0]  %s1, 1024, %s19, [#allocation5], 128, 128, 8
    $region5: #{tpu_custom_call.1} parent=1 // pred_fallthru
      _
    // Predicated region
    $region6: #{tpu_custom_call.1} parent=1 // pred_check
      _
    $region7: #{tpu_custom_call.1} parent=1 // pred_check_branch
      %26 = sbr.rel (0) target = $region9
    $region8: #{tpu_custom_call.1} parent=1 // pred_region
      %27 = dma.done [#allocation5], 1024
    $region9: #{tpu_custom_call.1} parent=1 // pred_fallthru
      _
    %s28 = smul.u32 0, 16
    loop: start=0, step=1, limit=2
    $region10: #{tpu_custom_call.1} parent=1 // loop_pre_header
      _
    $region11: #{tpu_custom_call.1} parent=1 // loop_header
      %s30 = sphi 0, %s34
      %p31 = scmp.ge.s32.totalorder %s30, 2
    $region12: #{tpu_custom_call.1} parent=1 // loop_header_branch
      %33 = sbr.rel (%p31) target = $region16
    $region13: #{tpu_custom_call.1} parent=1 // loop_body
      %s35 = smul.u32 %s30, 8
      %s36 = sadd.s32 %s28, %s35
      %s37 = sld [smem:[#allocation3 + %s36]]
      %s38 = scalar_lea.vmem [#allocation4], %s37
      %v39 = vld [vmem:[%s38] sm:$0x1]
      %s40 = scalar_lea.vmem [#allocation7], %s35
      %41 = vst [vmem:[%s40] sm:$0x1] %v39
      %s42 = sadd.s32 %s35, 1
      %s43 = sadd.s32 %s28, %s42
      %s44 = sld [smem:[#allocation3 + %s43]]
      %s45 = scalar_lea.vmem [#allocation4], %s44
      %v46 = vld [vmem:[%s45] sm:$0x1]
      %s47 = scalar_lea.vmem [#allocation7], %s42
      %48 = vst [vmem:[%s47] sm:$0x1] %v46
      %s49 = sadd.s32 %s35, 2
      %s50 = sadd.s32 %s28, %s49
      %s51 = sld [smem:[#allocation3 + %s50]]
      %s52 = scalar_lea.vmem [#allocation4], %s51
      %v53 = vld [vmem:[%s52] sm:$0x1]
      %s54 = scalar_lea.vmem [#allocation7], %s49
      %55 = vst [vmem:[%s54] sm:$0x1] %v53
      %s56 = sadd.s32 %s35, 3
      %s57 = sadd.s32 %s28, %s56
      %s58 = sld [smem:[#allocation3 + %s57]]
      %s59 = scalar_lea.vmem [#allocation4], %s58
      %v60 = vld [vmem:[%s59] sm:$0x1]
      %s61 = scalar_lea.vmem [#allocation7], %s56
      %62 = vst [vmem:[%s61] sm:$0x1] %v60
      %s63 = sadd.s32 %s35, 4
      %s64 = sadd.s32 %s28, %s63
      %s65 = sld [smem:[#allocation3 + %s64]]
      %s66 = scalar_lea.vmem [#allocation4], %s65
      %v67 = vld [vmem:[%s66] sm:$0x1]
      %s68 = scalar_lea.vmem [#allocation7], %s63
      %69 = vst [vmem:[%s68] sm:$0x1] %v67
      %s70 = sadd.s32 %s35, 5
      %s71 = sadd.s32 %s28, %s70
      %s72 = sld [smem:[#allocation3 + %s71]]
      %s73 = scalar_lea.vmem [#allocation4], %s72
      %v74 = vld [vmem:[%s73] sm:$0x1]
      %s75 = scalar_lea.vmem [#allocation7], %s70
      %76 = vst [vmem:[%s75] sm:$0x1] %v74
      %s77 = sadd.s32 %s35, 6
      %s78 = sadd.s32 %s28, %s77
      %s79 = sld [smem:[#allocation3 + %s78]]
      %s80 = scalar_lea.vmem [#allocation4], %s79
      %v81 = vld [vmem:[%s80] sm:$0x1]
      %s82 = scalar_lea.vmem [#allocation7], %s77
      %83 = vst [vmem:[%s82] sm:$0x1] %v81
      %s84 = sadd.s32 %s35, 7
      %s85 = sadd.s32 %s28, %s84
      %s86 = sld [smem:[#allocation3 + %s85]]
      %s87 = scalar_lea.vmem [#allocation4], %s86
      %v88 = vld [vmem:[%s87] sm:$0x1]
      %s89 = scalar_lea.vmem [#allocation7], %s84
      %90 = vst [vmem:[%s89] sm:$0x1] %v88
    $region14: #{tpu_custom_call.1} parent=1 // loop_footer
      %s34 = sadd.s32 1, %s30
    $region15: #{tpu_custom_call.1} parent=1 // loop_footer_branch
      %29 = sbr.rel target = $region11
    $region16: #{tpu_custom_call.1} parent=1 // loop_exit
      _
    // Predicated region
    $region17: #{tpu_custom_call.1} parent=1 // pred_check
      _
    $region18: #{tpu_custom_call.1} parent=1 // pred_check_branch
      %92 = sbr.rel (0) target = $region20
    $region19: #{tpu_custom_call.1} parent=1 // pred_region
      %s94 = ssub.s32 256, 256
      %95 = vsyncadd [#allocation6], %s94
      %s96 = sshll.u32 [#allocation7], 4
      %s97 = int_to_ptr.vmem [resolvable:$true] %s96
      %102 = dma.vmem_to_hbm [thread:$0]  %s97, 256, %s2, [#allocation6], 128, 128, 8
    $region20: #{tpu_custom_call.1} parent=1 // pred_fallthru
      _
    // Predicated region
    $region21: #{tpu_custom_call.1} parent=1 // pred_check
      _
    $region22: #{tpu_custom_call.1} parent=1 // pred_check_branch
      %104 = sbr.rel (0) target = $region24
    $region23: #{tpu_custom_call.1} parent=1 // pred_region
      %105 = dma.done [#allocation6], 256
    $region24: #{tpu_custom_call.1} parent=1 // pred_fallthru
      _
    %106 = vsyncpa [#allocation5], 1
    %107 = vsyncpa [#allocation6], 1

</llo_original>
